<compile_context>
chip_gen: v7x
topology: tpu7x:2x2x1
jax: 0.10.0
libtpu: 0.0.40
codegen_flags: <defaults>
</compile_context>

<pallas_src>
import functools

import jax
import jax.numpy as jnp
from jax import lax
from jax.experimental import pallas as pl
from jax.experimental.pallas import tpu as pltpu


def _lstm_kernel(x_ref, wih_ref, whh_ref, b_ref, wfc_ref, bfc_ref,
                 out_ref, pre_sc, *, seq_len, block_batch, hidden_size):
    T, BB, H = seq_len, block_batch, hidden_size

    # ---- Phase 0: input projection for every timestep of this batch block as ONE
    # MXU matmul (bf16 operands, f32 accumulation), off the serial h-chain; the
    # combined bias is folded in once rather than per step.
    # TODO(synk): for long sequences on v7x, chunk pre_sc over T (2-chunk ping-pong)
    # so the scratch stays O(chunk) instead of O(T) and phase 0 hides behind the
    # recurrence.
    pre_sc[...] = (jnp.dot(x_ref[...], wih_ref[...],
                           preferred_element_type=jnp.float32)
                   + b_ref[...])

    # Loop-invariant lane mask selecting the tanh ("g") quarter of the 4H gate axis
    # (PyTorch gate order along 4H is [i, f, g, o]).
    lane = lax.broadcasted_iota(jnp.int32, (BB, 4 * H), 1)
    g_mask = (lane >= 2 * H) & (lane < 3 * H)

    h0 = jnp.zeros((BB, H), jnp.float32)
    c0 = jnp.zeros((BB, H), jnp.float32)
    p0 = jnp.full((BB, H), -jnp.inf, jnp.float32)   # running max (pool='max')

    # ---- Phase 1: serial recurrence.  Per-step MXU matmul uses bf16 operands
    # (halves weight staging / pass count on the critical path); gates and state
    # stay f32 for the VPU/EUP math.
    # TODO(synk): holding W_hh resident via pltpu.matmul_push_rhs/acc_lhs/pop would
    # additionally remove the per-step weight staging, but the result path differs
    # across chips (MRF on v5e/v6e vs MRB on v7x); kept on portable jnp.dot.
    def step(t, carry):
        h, c, p = carry
        row = pl.multiple_of(t * BB, BB)
        gates = pre_sc[pl.ds(row, BB), :] + jnp.dot(
            h.astype(jnp.bfloat16), whh_ref[...],
            preferred_element_type=jnp.float32)               # (BB, 4H) f32
        # Full-vreg transcendentals (one sigmoid + one tanh EUP pass), then a single
        # select for the g gate.
        sig = jax.nn.sigmoid(gates)
        th = jnp.tanh(gates)
        acts = jnp.where(g_mask, th, sig)
        i_g = acts[:, 0 * H:1 * H]
        f_g = acts[:, 1 * H:2 * H]
        g_g = acts[:, 2 * H:3 * H]
        o_g = acts[:, 3 * H:4 * H]
        c_new = f_g * c + i_g * g_g
        h_new = o_g * jnp.tanh(c_new)
        return h_new, c_new, jnp.maximum(p, h_new)

    # Partial unroll: keeps LLO scheduling visibility without exploding instruction
    # memory / vreg live ranges at realistic sequence lengths.
    _, _, pooled = lax.fori_loop(0, T, step, (h0, c0, p0), unroll=min(T, 8))

    # ---- Phase 2: max-pooled hidden -> last_fc, lane-dense (BB, Op) unmasked store.
    out_ref[...] = (jnp.dot(pooled, wfc_ref[...],
                            preferred_element_type=jnp.float32)
                    + bfc_ref[...]).astype(out_ref.dtype)


def _vmem_limit_bytes(T, BB, I, H, Op):
    """Explicit scoped-VMEM budget (v5e defaults to only 16 MiB)."""
    f32, bf16 = 4, 2
    block_bytes = (T * BB * I * bf16            # x block
                   + I * 4 * H * bf16           # W_ih
                   + H * 4 * H * bf16           # W_hh
                   + 4 * H * f32                # fused bias
                   + H * Op * f32 + Op * f32    # fc weight / bias
                   + BB * Op * f32)             # output block
    scratch_bytes = T * BB * 4 * H * f32        # pre-gates scratch
    needed = 2 * block_bytes + scratch_bytes    # pipeline double-buffers the blocks
    return min(int(needed * 1.5) + (4 << 20), 96 << 20)


@jax.jit
def stateful_lstm_forward(x, params):
    """x: (B, T, I) float32 (PyTorch batch_first layout). Returns (B, O, 1)."""
    B, T, I = x.shape
    assert T >= 1  # pool='max' over an empty sequence is undefined
    H = params["w_hh"].shape[1]
    O = params["w_fc"].shape[0]

    BB = 8                                   # one f32 sublane tile per batch block
    n_bb = -(-B // BB)                       # batch blocks -> "parallel" grid axis
    Bp = n_bb * BB                           # (v7x: each TensorCore takes a shard)
    Op = ((O + 127) // 128) * 128            # lane-dense output width

    # Layout glue (pad / transpose / cast); fused into the surrounding jit graph.
    x_p = jnp.pad(x.astype(jnp.float32), ((0, Bp - B), (0, 0), (0, 0)))  # (Bp,T,I)
    x_a = (x_p.reshape(n_bb, BB, T, I)
               .transpose(0, 2, 1, 3)            # (n_bb, T, BB, I) time-major block
               .reshape(n_bb, T * BB, I)
               .astype(jnp.bfloat16))            # bf16 MXU operand, halves DMA

    wih_t = params["w_ih"].T.astype(jnp.bfloat16)                      # (I, 4H)
    whh_t = params["w_hh"].T.astype(jnp.bfloat16)                      # (H, 4H)
    bias = (params["b_ih"] + params["b_hh"]).astype(jnp.float32).reshape(1, 4 * H)
    wfc_t = jnp.zeros((H, Op), jnp.float32).at[:, :O].set(
        params["w_fc"].T.astype(jnp.float32))                          # (H, Op)
    bfc = jnp.zeros((1, Op), jnp.float32).at[:, :O].set(
        params["b_fc"].astype(jnp.float32).reshape(1, O))

    kernel = functools.partial(_lstm_kernel, seq_len=T, block_batch=BB,
                               hidden_size=H)

    out = pl.pallas_call(
        kernel,
        out_shape=jax.ShapeDtypeStruct((Bp, Op), jnp.float32),
        grid=(n_bb,),
        in_specs=[
            pl.BlockSpec((None, T * BB, I), lambda b: (b, 0, 0)),  # batch block of x
            pl.BlockSpec((I, 4 * H), lambda b: (0, 0)),
            pl.BlockSpec((H, 4 * H), lambda b: (0, 0)),
            pl.BlockSpec((1, 4 * H), lambda b: (0, 0)),
            pl.BlockSpec((H, Op), lambda b: (0, 0)),
            pl.BlockSpec((1, Op), lambda b: (0, 0)),
        ],
        out_specs=pl.BlockSpec((BB, Op), lambda b: (b, 0)),
        scratch_shapes=[
            pltpu.VMEM((T * BB, 4 * H), jnp.float32),   # x@W_ih + bias, all steps
        ],
        compiler_params=pltpu.CompilerParams(
            dimension_semantics=("parallel",),
            vmem_limit_bytes=_vmem_limit_bytes(T, BB, I, H, Op)),
    )(x_a, wih_t, whh_t, bias, wfc_t, bfc)

    # Padded batch rows run the LSTM on zero inputs and are sliced off here.
    # out.unsqueeze(1).transpose(1, 2) -> (B, O, 1)
    return out[:B, :O, None]


def _reference_forward(x, params):
    """Pure-JAX f32 reference of the same forward pass (correctness check)."""
    B, T, I = x.shape
    H = params["w_hh"].shape[1]
    wih_t = params["w_ih"].T
    whh_t = params["w_hh"].T
    bias = params["b_ih"] + params["b_hh"]

    def step(carry, x_t):
        h, c = carry
        gates = x_t @ wih_t + h @ whh_t + bias
        i = jax.nn.sigmoid(gates[:, 0 * H:1 * H])
        f = jax.nn.sigmoid(gates[:, 1 * H:2 * H])
        g = jnp.tanh(gates[:, 2 * H:3 * H])
        o = jax.nn.sigmoid(gates[:, 3 * H:4 * H])
        c = f * c + i * g
        h = o * jnp.tanh(c)
        return (h, c), h

    h0 = jnp.zeros((B, H), jnp.float32)
    c0 = jnp.zeros((B, H), jnp.float32)
    _, hs = lax.scan(step, (h0, c0), jnp.transpose(x, (1, 0, 2)))
    pooled = jnp.max(hs, axis=0)                       # max over seq (B, H)
    out = pooled @ params["w_fc"].T + params["b_fc"]   # (B, O)
    return out[:, :, None]


def init_params(key, input_size, hidden_size, output_size):
    """Deterministic init mimicking PyTorch's U(-1/sqrt(H), 1/sqrt(H))."""
    ks = jax.random.split(key, 6)
    bound = 1.0 / jnp.sqrt(jnp.float32(hidden_size))
    u = lambda k, shape: jax.random.uniform(k, shape, jnp.float32, -bound, bound)
    return {
        "w_ih": u(ks[0], (4 * hidden_size, input_size)),
        "w_hh": u(ks[1], (4 * hidden_size, hidden_size)),
        "b_ih": u(ks[2], (4 * hidden_size,)),
        "b_hh": u(ks[3], (4 * hidden_size,)),
        "w_fc": u(ks[4], (output_size, hidden_size)),
        "b_fc": u(ks[5], (output_size,)),
    }


if __name__ == "__main__":
    # Small shapes: batch=2, seq=8, input_size=4, hidden_size=32, output_size=8,
    # layers=1, unidirectional, pool='max'.
    # TODO(synk): multi-layer / bidirectional / 'mean'-'attention'-'last' pooling /
    # PackedSequence / state_connected branches of the PyTorch module are not
    # exercised in this synthetic kernel.
    B, T, I, H, O = 2, 8, 4, 32, 8

    key = jax.random.PRNGKey(0)
    k_x, k_p = jax.random.split(key)
    x = jax.random.normal(k_x, (B, T, I), jnp.float32)   # (batch, seq, input)
    params = init_params(k_p, I, H, O)

    out = stateful_lstm_forward(x, params)
    out = jax.block_until_ready(out)

    ref = _reference_forward(x, params)
    assert out.shape == (B, O, 1), out.shape
    err = jnp.max(jnp.abs(out - ref))
    # bf16 MXU operands inside the kernel -> relaxed tolerance vs. the f32 reference.
    assert err < 5e-2, f"max abs err {err}"

    print("KERNEL_OK")
</pallas_src>

<mosaic_0001>
module attributes {stable_mosaic.version = 11 : i64} {
  func.func @_lstm_kernel(%arg0: i32, %arg1: memref<1x64x4xbf16, #tpu.memory_space<vmem>>, %arg2: memref<4x128xbf16, #tpu.memory_space<vmem>>, %arg3: memref<32x128xbf16, #tpu.memory_space<vmem>>, %arg4: memref<1x128xf32, #tpu.memory_space<vmem>>, %arg5: memref<32x128xf32, #tpu.memory_space<vmem>>, %arg6: memref<1x128xf32, #tpu.memory_space<vmem>>, %arg7: memref<8x128xf32, #tpu.memory_space<vmem>>, %arg8: memref<64x128xf32, #tpu.memory_space<vmem>>) attributes {dimension_semantics = [#tpu.dimension_semantics<parallel>], iteration_bounds = array<i64: 1>, scalar_prefetch = 0 : i64, scratch_operands = 1 : i64, tpu.core_type = #tpu.core_type<tc>, window_params = [{transform_indices = @transform_0, window_bounds = array<i64: 1, 64, 4>}, {pipeline_mode = #tpu.pipeline_mode<synchronous>, transform_indices = @transform_1, window_bounds = array<i64: 4, 128>}, {pipeline_mode = #tpu.pipeline_mode<synchronous>, transform_indices = @transform_2, window_bounds = array<i64: 32, 128>}, {pipeline_mode = #tpu.pipeline_mode<synchronous>, transform_indices = @transform_3, window_bounds = array<i64: 1, 128>}, {pipeline_mode = #tpu.pipeline_mode<synchronous>, transform_indices = @transform_4, window_bounds = array<i64: 32, 128>}, {pipeline_mode = #tpu.pipeline_mode<synchronous>, transform_indices = @transform_5, window_bounds = array<i64: 1, 128>}, {transform_indices = @transform_6, window_bounds = array<i64: 8, 128>}]} {
    %c0 = arith.constant 0 : index
    %c0_0 = arith.constant 0 : index
    %c0_1 = arith.constant 0 : index
    %0 = vector.load %arg1[%c0, %c0_0, %c0_1] : memref<1x64x4xbf16, #tpu.memory_space<vmem>>, vector<1x64x4xbf16>
    %1 = vector.shape_cast %0 : vector<1x64x4xbf16> to vector<64x4xbf16>
    %c0_2 = arith.constant 0 : index
    %c0_3 = arith.constant 0 : index
    %2 = vector.load %arg2[%c0_2, %c0_3] : memref<4x128xbf16, #tpu.memory_space<vmem>>, vector<4x128xbf16>
    %cst = arith.constant dense<0.000000e+00> : vector<64x128xf32>
    %3 = tpu.matmul %1, %2, %cst {dimension_numbers = #tpu.dot_dimension_numbers<[1], [0], [0], [1], [0, 0, 1, 1], [], []>} : vector<64x4xbf16>, vector<4x128xbf16>, vector<64x128xf32> -> vector<64x128xf32>
    %c0_4 = arith.constant 0 : index
    %c0_5 = arith.constant 0 : index
    %4 = vector.load %arg4[%c0_4, %c0_5] : memref<1x128xf32, #tpu.memory_space<vmem>>, vector<1x128xf32>
    %5 = vector.broadcast %4 : vector<1x128xf32> to vector<64x128xf32>
    %6 = arith.addf %3, %5 : vector<64x128xf32>
    %c0_6 = arith.constant 0 : index
    %c0_7 = arith.constant 0 : index
    %7 = vector.load %arg8[%c0_6, %c0_7] : memref<64x128xf32, #tpu.memory_space<vmem>>, vector<64x128xf32>
    tpu.vector_store %arg8[%c0_6, %c0_7], %6 {strides = array<i32>} : memref<64x128xf32, #tpu.memory_space<vmem>>, vector<64x128xf32>,
    %8 = tpu.iota {dimensions = array<i32: 1>} : vector<8x128xi32>
    %c64_i32 = arith.constant 64 : i32
    %9 = vector.broadcast %c64_i32 : i32 to vector<8x128xi32>
    %10 = arith.cmpi sge, %8, %9 : vector<8x128xi32>
    %c96_i32 = arith.constant 96 : i32
    %11 = vector.broadcast %c96_i32 : i32 to vector<8x128xi32>
    %12 = arith.cmpi slt, %8, %11 : vector<8x128xi32>
    %13 = arith.andi %10, %12 : vector<8x128xi1>
    %cst_8 = arith.constant 0.000000e+00 : f32
    %14 = vector.broadcast %cst_8 : f32 to vector<8x32xf32>
    %cst_9 = arith.constant 0.000000e+00 : f32
    %15 = vector.broadcast %cst_9 : f32 to vector<8x32xf32>
    %cst_10 = arith.constant 0xFF800000 : f32
    %16 = vector.broadcast %cst_10 : f32 to vector<8x32xf32>
    %c0_i32 = arith.constant 0 : i32
    %c8_i32 = arith.constant 8 : i32
    %17 = arith.muli %c0_i32, %c8_i32 : i32
    %18 = tpu.assume_multiple %17, 8 : i32
    %19 = arith.index_cast %18 : i32 to index
    %c0_11 = arith.constant 0 : index
    %20 = vector.load %arg8[%19, %c0_11] : memref<64x128xf32, #tpu.memory_space<vmem>>, vector<8x128xf32>
    %21 = arith.truncf %14 : vector<8x32xf32> to vector<8x32xbf16>
    %c0_12 = arith.constant 0 : index
    %c0_13 = arith.constant 0 : index
    %22 = vector.load %arg3[%c0_12, %c0_13] : memref<32x128xbf16, #tpu.memory_space<vmem>>, vector<32x128xbf16>
    %cst_14 = arith.constant dense<0.000000e+00> : vector<8x128xf32>
    %23 = tpu.matmul %21, %22, %cst_14 {dimension_numbers = #tpu.dot_dimension_numbers<[1], [0], [0], [1], [0, 0, 1, 1], [], []>} : vector<8x32xbf16>, vector<32x128xbf16>, vector<8x128xf32> -> vector<8x128xf32>
    %24 = arith.addf %20, %23 : vector<8x128xf32>
    %25 = arith.negf %24 : vector<8x128xf32>
    %26 = math.exp %25 : vector<8x128xf32>
    %cst_15 = arith.constant 1.000000e+00 : f32
    %27 = vector.broadcast %cst_15 : f32 to vector<8x128xf32>
    %28 = arith.addf %27, %26 : vector<8x128xf32>
    %29 = arith.divf %27, %28 : vector<8x128xf32>
    %30 = math.tanh %24 : vector<8x128xf32>
    %31 = arith.select %13, %30, %29 : vector<8x128xi1>, vector<8x128xf32>
    %32 = vector.extract_strided_slice %31 {offsets = [0, 0], sizes = [8, 32], strides = [1, 1]} : vector<8x128xf32> to vector<8x32xf32>
    %33 = vector.extract_strided_slice %31 {offsets = [0, 32], sizes = [8, 32], strides = [1, 1]} : vector<8x128xf32> to vector<8x32xf32>
    %34 = vector.extract_strided_slice %31 {offsets = [0, 64], sizes = [8, 32], strides = [1, 1]} : vector<8x128xf32> to vector<8x32xf32>
    %35 = vector.extract_strided_slice %31 {offsets = [0, 96], sizes = [8, 32], strides = [1, 1]} : vector<8x128xf32> to vector<8x32xf32>
    %36 = arith.mulf %33, %15 : vector<8x32xf32>
    %37 = arith.mulf %32, %34 : vector<8x32xf32>
    %38 = arith.addf %36, %37 : vector<8x32xf32>
    %39 = math.tanh %38 : vector<8x32xf32>
    %40 = arith.mulf %35, %39 : vector<8x32xf32>
    %41 = arith.maximumf %16, %40 : vector<8x32xf32>
    %c1_i32 = arith.constant 1 : i32
    %c8_i32_16 = arith.constant 8 : i32
    %42 = arith.muli %c1_i32, %c8_i32_16 : i32
    %43 = tpu.assume_multiple %42, 8 : i32
    %44 = arith.index_cast %43 : i32 to index
    %c0_17 = arith.constant 0 : index
    %45 = vector.load %arg8[%44, %c0_17] : memref<64x128xf32, #tpu.memory_space<vmem>>, vector<8x128xf32>
    %46 = arith.truncf %40 : vector<8x32xf32> to vector<8x32xbf16>
    %c0_18 = arith.constant 0 : index
    %c0_19 = arith.constant 0 : index
    %47 = vector.load %arg3[%c0_18, %c0_19] : memref<32x128xbf16, #tpu.memory_space<vmem>>, vector<32x128xbf16>
    %cst_20 = arith.constant dense<0.000000e+00> : vector<8x128xf32>
    %48 = tpu.matmul %46, %47, %cst_20 {dimension_numbers = #tpu.dot_dimension_numbers<[1], [0], [0], [1], [0, 0, 1, 1], [], []>} : vector<8x32xbf16>, vector<32x128xbf16>, vector<8x128xf32> -> vector<8x128xf32>
    %49 = arith.addf %45, %48 : vector<8x128xf32>
    %50 = arith.negf %49 : vector<8x128xf32>
    %51 = math.exp %50 : vector<8x128xf32>
    %cst_21 = arith.constant 1.000000e+00 : f32
    %52 = vector.broadcast %cst_21 : f32 to vector<8x128xf32>
    %53 = arith.addf %52, %51 : vector<8x128xf32>
    %54 = arith.divf %52, %53 : vector<8x128xf32>
    %55 = math.tanh %49 : vector<8x128xf32>
    %56 = arith.select %13, %55, %54 : vector<8x128xi1>, vector<8x128xf32>
    %57 = vector.extract_strided_slice %56 {offsets = [0, 0], sizes = [8, 32], strides = [1, 1]} : vector<8x128xf32> to vector<8x32xf32>
    %58 = vector.extract_strided_slice %56 {offsets = [0, 32], sizes = [8, 32], strides = [1, 1]} : vector<8x128xf32> to vector<8x32xf32>
    %59 = vector.extract_strided_slice %56 {offsets = [0, 64], sizes = [8, 32], strides = [1, 1]} : vector<8x128xf32> to vector<8x32xf32>
    %60 = vector.extract_strided_slice %56 {offsets = [0, 96], sizes = [8, 32], strides = [1, 1]} : vector<8x128xf32> to vector<8x32xf32>
    %61 = arith.mulf %58, %38 : vector<8x32xf32>
    %62 = arith.mulf %57, %59 : vector<8x32xf32>
    %63 = arith.addf %61, %62 : vector<8x32xf32>
    %64 = math.tanh %63 : vector<8x32xf32>
    %65 = arith.mulf %60, %64 : vector<8x32xf32>
    %66 = arith.maximumf %41, %65 : vector<8x32xf32>
    %c2_i32 = arith.constant 2 : i32
    %c8_i32_22 = arith.constant 8 : i32
    %67 = arith.muli %c2_i32, %c8_i32_22 : i32
    %68 = tpu.assume_multiple %67, 8 : i32
    %69 = arith.index_cast %68 : i32 to index
    %c0_23 = arith.constant 0 : index
    %70 = vector.load %arg8[%69, %c0_23] : memref<64x128xf32, #tpu.memory_space<vmem>>, vector<8x128xf32>
    %71 = arith.truncf %65 : vector<8x32xf32> to vector<8x32xbf16>
    %c0_24 = arith.constant 0 : index
    %c0_25 = arith.constant 0 : index
    %72 = vector.load %arg3[%c0_24, %c0_25] : memref<32x128xbf16, #tpu.memory_space<vmem>>, vector<32x128xbf16>
    %cst_26 = arith.constant dense<0.000000e+00> : vector<8x128xf32>
    %73 = tpu.matmul %71, %72, %cst_26 {dimension_numbers = #tpu.dot_dimension_numbers<[1], [0], [0], [1], [0, 0, 1, 1], [], []>} : vector<8x32xbf16>, vector<32x128xbf16>, vector<8x128xf32> -> vector<8x128xf32>
    %74 = arith.addf %70, %73 : vector<8x128xf32>
    %75 = arith.negf %74 : vector<8x128xf32>
    %76 = math.exp %75 : vector<8x128xf32>
    %cst_27 = arith.constant 1.000000e+00 : f32
    %77 = vector.broadcast %cst_27 : f32 to vector<8x128xf32>
    %78 = arith.addf %77, %76 : vector<8x128xf32>
    %79 = arith.divf %77, %78 : vector<8x128xf32>
    %80 = math.tanh %74 : vector<8x128xf32>
    %81 = arith.select %13, %80, %79 : vector<8x128xi1>, vector<8x128xf32>
    %82 = vector.extract_strided_slice %81 {offsets = [0, 0], sizes = [8, 32], strides = [1, 1]} : vector<8x128xf32> to vector<8x32xf32>
    %83 = vector.extract_strided_slice %81 {offsets = [0, 32], sizes = [8, 32], strides = [1, 1]} : vector<8x128xf32> to vector<8x32xf32>
    %84 = vector.extract_strided_slice %81 {offsets = [0, 64], sizes = [8, 32], strides = [1, 1]} : vector<8x128xf32> to vector<8x32xf32>
    %85 = vector.extract_strided_slice %81 {offsets = [0, 96], sizes = [8, 32], strides = [1, 1]} : vector<8x128xf32> to vector<8x32xf32>
    %86 = arith.mulf %83, %63 : vector<8x32xf32>
    %87 = arith.mulf %82, %84 : vector<8x32xf32>
    %88 = arith.addf %86, %87 : vector<8x32xf32>
    %89 = math.tanh %88 : vector<8x32xf32>
    %90 = arith.mulf %85, %89 : vector<8x32xf32>
    %91 = arith.maximumf %66, %90 : vector<8x32xf32>
    %c3_i32 = arith.constant 3 : i32
    %c8_i32_28 = arith.constant 8 : i32
    %92 = arith.muli %c3_i32, %c8_i32_28 : i32
    %93 = tpu.assume_multiple %92, 8 : i32
    %94 = arith.index_cast %93 : i32 to index
    %c0_29 = arith.constant 0 : index
    %95 = vector.load %arg8[%94, %c0_29] : memref<64x128xf32, #tpu.memory_space<vmem>>, vector<8x128xf32>
    %96 = arith.truncf %90 : vector<8x32xf32> to vector<8x32xbf16>
    %c0_30 = arith.constant 0 : index
    %c0_31 = arith.constant 0 : index
    %97 = vector.load %arg3[%c0_30, %c0_31] : memref<32x128xbf16, #tpu.memory_space<vmem>>, vector<32x128xbf16>
    %cst_32 = arith.constant dense<0.000000e+00> : vector<8x128xf32>
    %98 = tpu.matmul %96, %97, %cst_32 {dimension_numbers = #tpu.dot_dimension_numbers<[1], [0], [0], [1], [0, 0, 1, 1], [], []>} : vector<8x32xbf16>, vector<32x128xbf16>, vector<8x128xf32> -> vector<8x128xf32>
    %99 = arith.addf %95, %98 : vector<8x128xf32>
    %100 = arith.negf %99 : vector<8x128xf32>
    %101 = math.exp %100 : vector<8x128xf32>
    %cst_33 = arith.constant 1.000000e+00 : f32
    %102 = vector.broadcast %cst_33 : f32 to vector<8x128xf32>
    %103 = arith.addf %102, %101 : vector<8x128xf32>
    %104 = arith.divf %102, %103 : vector<8x128xf32>
    %105 = math.tanh %99 : vector<8x128xf32>
    %106 = arith.select %13, %105, %104 : vector<8x128xi1>, vector<8x128xf32>
    %107 = vector.extract_strided_slice %106 {offsets = [0, 0], sizes = [8, 32], strides = [1, 1]} : vector<8x128xf32> to vector<8x32xf32>
    %108 = vector.extract_strided_slice %106 {offsets = [0, 32], sizes = [8, 32], strides = [1, 1]} : vector<8x128xf32> to vector<8x32xf32>
    %109 = vector.extract_strided_slice %106 {offsets = [0, 64], sizes = [8, 32], strides = [1, 1]} : vector<8x128xf32> to vector<8x32xf32>
    %110 = vector.extract_strided_slice %106 {offsets = [0, 96], sizes = [8, 32], strides = [1, 1]} : vector<8x128xf32> to vector<8x32xf32>
    %111 = arith.mulf %108, %88 : vector<8x32xf32>
    %112 = arith.mulf %107, %109 : vector<8x32xf32>
    %113 = arith.addf %111, %112 : vector<8x32xf32>
    %114 = math.tanh %113 : vector<8x32xf32>
    %115 = arith.mulf %110, %114 : vector<8x32xf32>
    %116 = arith.maximumf %91, %115 : vector<8x32xf32>
    %c4_i32 = arith.constant 4 : i32
    %c8_i32_34 = arith.constant 8 : i32
    %117 = arith.muli %c4_i32, %c8_i32_34 : i32
    %118 = tpu.assume_multiple %117, 8 : i32
    %119 = arith.index_cast %118 : i32 to index
    %c0_35 = arith.constant 0 : index
    %120 = vector.load %arg8[%119, %c0_35] : memref<64x128xf32, #tpu.memory_space<vmem>>, vector<8x128xf32>
    %121 = arith.truncf %115 : vector<8x32xf32> to vector<8x32xbf16>
    %c0_36 = arith.constant 0 : index
    %c0_37 = arith.constant 0 : index
    %122 = vector.load %arg3[%c0_36, %c0_37] : memref<32x128xbf16, #tpu.memory_space<vmem>>, vector<32x128xbf16>
    %cst_38 = arith.constant dense<0.000000e+00> : vector<8x128xf32>
    %123 = tpu.matmul %121, %122, %cst_38 {dimension_numbers = #tpu.dot_dimension_numbers<[1], [0], [0], [1], [0, 0, 1, 1], [], []>} : vector<8x32xbf16>, vector<32x128xbf16>, vector<8x128xf32> -> vector<8x128xf32>
    %124 = arith.addf %120, %123 : vector<8x128xf32>
    %125 = arith.negf %124 : vector<8x128xf32>
    %126 = math.exp %125 : vector<8x128xf32>
    %cst_39 = arith.constant 1.000000e+00 : f32
    %127 = vector.broadcast %cst_39 : f32 to vector<8x128xf32>
    %128 = arith.addf %127, %126 : vector<8x128xf32>
    %129 = arith.divf %127, %128 : vector<8x128xf32>
    %130 = math.tanh %124 : vector<8x128xf32>
    %131 = arith.select %13, %130, %129 : vector<8x128xi1>, vector<8x128xf32>
    %132 = vector.extract_strided_slice %131 {offsets = [0, 0], sizes = [8, 32], strides = [1, 1]} : vector<8x128xf32> to vector<8x32xf32>
    %133 = vector.extract_strided_slice %131 {offsets = [0, 32], sizes = [8, 32], strides = [1, 1]} : vector<8x128xf32> to vector<8x32xf32>
    %134 = vector.extract_strided_slice %131 {offsets = [0, 64], sizes = [8, 32], strides = [1, 1]} : vector<8x128xf32> to vector<8x32xf32>
    %135 = vector.extract_strided_slice %131 {offsets = [0, 96], sizes = [8, 32], strides = [1, 1]} : vector<8x128xf32> to vector<8x32xf32>
    %136 = arith.mulf %133, %113 : vector<8x32xf32>
    %137 = arith.mulf %132, %134 : vector<8x32xf32>
    %138 = arith.addf %136, %137 : vector<8x32xf32>
    %139 = math.tanh %138 : vector<8x32xf32>
    %140 = arith.mulf %135, %139 : vector<8x32xf32>
    %141 = arith.maximumf %116, %140 : vector<8x32xf32>
    %c5_i32 = arith.constant 5 : i32
    %c8_i32_40 = arith.constant 8 : i32
    %142 = arith.muli %c5_i32, %c8_i32_40 : i32
    %143 = tpu.assume_multiple %142, 8 : i32
    %144 = arith.index_cast %143 : i32 to index
    %c0_41 = arith.constant 0 : index
    %145 = vector.load %arg8[%144, %c0_41] : memref<64x128xf32, #tpu.memory_space<vmem>>, vector<8x128xf32>
    %146 = arith.truncf %140 : vector<8x32xf32> to vector<8x32xbf16>
    %c0_42 = arith.constant 0 : index
    %c0_43 = arith.constant 0 : index
    %147 = vector.load %arg3[%c0_42, %c0_43] : memref<32x128xbf16, #tpu.memory_space<vmem>>, vector<32x128xbf16>
    %cst_44 = arith.constant dense<0.000000e+00> : vector<8x128xf32>
    %148 = tpu.matmul %146, %147, %cst_44 {dimension_numbers = #tpu.dot_dimension_numbers<[1], [0], [0], [1], [0, 0, 1, 1], [], []>} : vector<8x32xbf16>, vector<32x128xbf16>, vector<8x128xf32> -> vector<8x128xf32>
    %149 = arith.addf %145, %148 : vector<8x128xf32>
    %150 = arith.negf %149 : vector<8x128xf32>
    %151 = math.exp %150 : vector<8x128xf32>
    %cst_45 = arith.constant 1.000000e+00 : f32
    %152 = vector.broadcast %cst_45 : f32 to vector<8x128xf32>
    %153 = arith.addf %152, %151 : vector<8x128xf32>
    %154 = arith.divf %152, %153 : vector<8x128xf32>
    %155 = math.tanh %149 : vector<8x128xf32>
    %156 = arith.select %13, %155, %154 : vector<8x128xi1>, vector<8x128xf32>
    %157 = vector.extract_strided_slice %156 {offsets = [0, 0], sizes = [8, 32], strides = [1, 1]} : vector<8x128xf32> to vector<8x32xf32>
    %158 = vector.extract_strided_slice %156 {offsets = [0, 32], sizes = [8, 32], strides = [1, 1]} : vector<8x128xf32> to vector<8x32xf32>
    %159 = vector.extract_strided_slice %156 {offsets = [0, 64], sizes = [8, 32], strides = [1, 1]} : vector<8x128xf32> to vector<8x32xf32>
    %160 = vector.extract_strided_slice %156 {offsets = [0, 96], sizes = [8, 32], strides = [1, 1]} : vector<8x128xf32> to vector<8x32xf32>
    %161 = arith.mulf %158, %138 : vector<8x32xf32>
    %162 = arith.mulf %157, %159 : vector<8x32xf32>
    %163 = arith.addf %161, %162 : vector<8x32xf32>
    %164 = math.tanh %163 : vector<8x32xf32>
    %165 = arith.mulf %160, %164 : vector<8x32xf32>
    %166 = arith.maximumf %141, %165 : vector<8x32xf32>
    %c6_i32 = arith.constant 6 : i32
    %c8_i32_46 = arith.constant 8 : i32
    %167 = arith.muli %c6_i32, %c8_i32_46 : i32
    %168 = tpu.assume_multiple %167, 8 : i32
    %169 = arith.index_cast %168 : i32 to index
    %c0_47 = arith.constant 0 : index
    %170 = vector.load %arg8[%169, %c0_47] : memref<64x128xf32, #tpu.memory_space<vmem>>, vector<8x128xf32>
    %171 = arith.truncf %165 : vector<8x32xf32> to vector<8x32xbf16>
    %c0_48 = arith.constant 0 : index
    %c0_49 = arith.constant 0 : index
    %172 = vector.load %arg3[%c0_48, %c0_49] : memref<32x128xbf16, #tpu.memory_space<vmem>>, vector<32x128xbf16>
    %cst_50 = arith.constant dense<0.000000e+00> : vector<8x128xf32>
    %173 = tpu.matmul %171, %172, %cst_50 {dimension_numbers = #tpu.dot_dimension_numbers<[1], [0], [0], [1], [0, 0, 1, 1], [], []>} : vector<8x32xbf16>, vector<32x128xbf16>, vector<8x128xf32> -> vector<8x128xf32>
    %174 = arith.addf %170, %173 : vector<8x128xf32>
    %175 = arith.negf %174 : vector<8x128xf32>
    %176 = math.exp %175 : vector<8x128xf32>
    %cst_51 = arith.constant 1.000000e+00 : f32
    %177 = vector.broadcast %cst_51 : f32 to vector<8x128xf32>
    %178 = arith.addf %177, %176 : vector<8x128xf32>
    %179 = arith.divf %177, %178 : vector<8x128xf32>
    %180 = math.tanh %174 : vector<8x128xf32>
    %181 = arith.select %13, %180, %179 : vector<8x128xi1>, vector<8x128xf32>
    %182 = vector.extract_strided_slice %181 {offsets = [0, 0], sizes = [8, 32], strides = [1, 1]} : vector<8x128xf32> to vector<8x32xf32>
    %183 = vector.extract_strided_slice %181 {offsets = [0, 32], sizes = [8, 32], strides = [1, 1]} : vector<8x128xf32> to vector<8x32xf32>
    %184 = vector.extract_strided_slice %181 {offsets = [0, 64], sizes = [8, 32], strides = [1, 1]} : vector<8x128xf32> to vector<8x32xf32>
    %185 = vector.extract_strided_slice %181 {offsets = [0, 96], sizes = [8, 32], strides = [1, 1]} : vector<8x128xf32> to vector<8x32xf32>
    %186 = arith.mulf %183, %163 : vector<8x32xf32>
    %187 = arith.mulf %182, %184 : vector<8x32xf32>
    %188 = arith.addf %186, %187 : vector<8x32xf32>
    %189 = math.tanh %188 : vector<8x32xf32>
    %190 = arith.mulf %185, %189 : vector<8x32xf32>
    %191 = arith.maximumf %166, %190 : vector<8x32xf32>
    %c7_i32 = arith.constant 7 : i32
    %c8_i32_52 = arith.constant 8 : i32
    %192 = arith.muli %c7_i32, %c8_i32_52 : i32
    %193 = tpu.assume_multiple %192, 8 : i32
    %194 = arith.index_cast %193 : i32 to index
    %c0_53 = arith.constant 0 : index
    %195 = vector.load %arg8[%194, %c0_53] : memref<64x128xf32, #tpu.memory_space<vmem>>, vector<8x128xf32>
    %196 = arith.truncf %190 : vector<8x32xf32> to vector<8x32xbf16>
    %c0_54 = arith.constant 0 : index
    %c0_55 = arith.constant 0 : index
    %197 = vector.load %arg3[%c0_54, %c0_55] : memref<32x128xbf16, #tpu.memory_space<vmem>>, vector<32x128xbf16>
    %cst_56 = arith.constant dense<0.000000e+00> : vector<8x128xf32>
    %198 = tpu.matmul %196, %197, %cst_56 {dimension_numbers = #tpu.dot_dimension_numbers<[1], [0], [0], [1], [0, 0, 1, 1], [], []>} : vector<8x32xbf16>, vector<32x128xbf16>, vector<8x128xf32> -> vector<8x128xf32>
    %199 = arith.addf %195, %198 : vector<8x128xf32>
    %200 = arith.negf %199 : vector<8x128xf32>
    %201 = math.exp %200 : vector<8x128xf32>
    %cst_57 = arith.constant 1.000000e+00 : f32
    %202 = vector.broadcast %cst_57 : f32 to vector<8x128xf32>
    %203 = arith.addf %202, %201 : vector<8x128xf32>
    %204 = arith.divf %202, %203 : vector<8x128xf32>
    %205 = math.tanh %199 : vector<8x128xf32>
    %206 = arith.select %13, %205, %204 : vector<8x128xi1>, vector<8x128xf32>
    %207 = vector.extract_strided_slice %206 {offsets = [0, 0], sizes = [8, 32], strides = [1, 1]} : vector<8x128xf32> to vector<8x32xf32>
    %208 = vector.extract_strided_slice %206 {offsets = [0, 32], sizes = [8, 32], strides = [1, 1]} : vector<8x128xf32> to vector<8x32xf32>
    %209 = vector.extract_strided_slice %206 {offsets = [0, 64], sizes = [8, 32], strides = [1, 1]} : vector<8x128xf32> to vector<8x32xf32>
    %210 = vector.extract_strided_slice %206 {offsets = [0, 96], sizes = [8, 32], strides = [1, 1]} : vector<8x128xf32> to vector<8x32xf32>
    %211 = arith.mulf %208, %188 : vector<8x32xf32>
    %212 = arith.mulf %207, %209 : vector<8x32xf32>
    %213 = arith.addf %211, %212 : vector<8x32xf32>
    %214 = math.tanh %213 : vector<8x32xf32>
    %215 = arith.mulf %210, %214 : vector<8x32xf32>
    %216 = arith.maximumf %191, %215 : vector<8x32xf32>
    %c8_i32_58 = arith.constant 8 : i32
    %c0_59 = arith.constant 0 : index
    %c0_60 = arith.constant 0 : index
    %217 = vector.load %arg5[%c0_59, %c0_60] : memref<32x128xf32, #tpu.memory_space<vmem>>, vector<32x128xf32>
    %cst_61 = arith.constant dense<0.000000e+00> : vector<8x128xf32>
    %218 = tpu.matmul %216, %217, %cst_61 {dimension_numbers = #tpu.dot_dimension_numbers<[1], [0], [0], [1], [0, 0, 1, 1], [], []>} : vector<8x32xf32>, vector<32x128xf32>, vector<8x128xf32> -> vector<8x128xf32>
    %c0_62 = arith.constant 0 : index
    %c0_63 = arith.constant 0 : index
    %219 = vector.load %arg6[%c0_62, %c0_63] : memref<1x128xf32, #tpu.memory_space<vmem>>, vector<1x128xf32>
    %220 = vector.broadcast %219 : vector<1x128xf32> to vector<8x128xf32>
    %221 = arith.addf %218, %220 : vector<8x128xf32>
    %c0_64 = arith.constant 0 : index
    %c0_65 = arith.constant 0 : index
    %222 = vector.load %arg7[%c0_64, %c0_65] : memref<8x128xf32, #tpu.memory_space<vmem>>, vector<8x128xf32>
    tpu.vector_store %arg7[%c0_64, %c0_65], %221 {strides = array<i32>} : memref<8x128xf32, #tpu.memory_space<vmem>>, vector<8x128xf32>,
    return
  }
  func.func @transform_0(%arg0: i32) -> (i32, i32, i32) {
    %c0_i32 = arith.constant 0 : i32
    %c0_i32_0 = arith.constant 0 : i32
    %c0_i32_1 = arith.constant 0 : i32
    return %arg0, %c0_i32, %c0_i32_0 : i32, i32, i32
  }
  func.func @transform_1(%arg0: i32) -> (i32, i32) {
    %c0_i32 = arith.constant 0 : i32
    %c0_i32_0 = arith.constant 0 : i32
    %c0_i32_1 = arith.constant 0 : i32
    return %c0_i32, %c0_i32_0 : i32, i32
  }
  func.func @transform_2(%arg0: i32) -> (i32, i32) {
    %c0_i32 = arith.constant 0 : i32
    %c0_i32_0 = arith.constant 0 : i32
    %c0_i32_1 = arith.constant 0 : i32
    return %c0_i32, %c0_i32_0 : i32, i32
  }
  func.func @transform_3(%arg0: i32) -> (i32, i32) {
    %c0_i32 = arith.constant 0 : i32
    %c0_i32_0 = arith.constant 0 : i32
    %c0_i32_1 = arith.constant 0 : i32
    return %c0_i32, %c0_i32_0 : i32, i32
  }
  func.func @transform_4(%arg0: i32) -> (i32, i32) {
    %c0_i32 = arith.constant 0 : i32
    %c0_i32_0 = arith.constant 0 : i32
    %c0_i32_1 = arith.constant 0 : i32
    return %c0_i32, %c0_i32_0 : i32, i32
  }
  func.func @transform_5(%arg0: i32) -> (i32, i32) {
    %c0_i32 = arith.constant 0 : i32
    %c0_i32_0 = arith.constant 0 : i32
    %c0_i32_1 = arith.constant 0 : i32
    return %c0_i32, %c0_i32_0 : i32, i32
  }
  func.func @transform_6(%arg0: i32) -> (i32, i32) {
    %c0_i32 = arith.constant 0 : i32
    %c0_i32_0 = arith.constant 0 : i32
    return %arg0, %c0_i32 : i32, i32
  }
}

</mosaic_0001>

<llo_original>
// kernel: stateful_lstm_forward.1
$region0: #{stateful_lstm_forward.1}
  #allocation0 [shape = 'u32[]', space=smem, size = 0x4, offset = 0x4, fixed_abs, tag = 'smem constant byte address 0x4 - core index']
  #allocation1 [shape = 'u32[144,128]{1,0:T(1,128)}', space=vmem, size = 0x12000, scoped, tag = 'internal scratch']
  #allocation2 [shape = 'f32[64,128]{1,0:T(8,128)}', space=vmem, size = 0x8000, scoped, tag = 'scratch operand']
  %s0 = inlined_call_operand.vmem [shape: bf16[1,64,4], index: 0, kind: input, shape index: {}]
  %s1 = inlined_call_operand.vmem [shape: bf16[4,128], index: 1, kind: input, shape index: {}]
  %s2 = inlined_call_operand.vmem [shape: bf16[32,128], index: 2, kind: input, shape index: {}]
  %s3 = inlined_call_operand.vmem [shape: f32[1,128], index: 3, kind: input, shape index: {}]
  %s4 = inlined_call_operand.vmem [shape: f32[32,128], index: 4, kind: input, shape index: {}]
  %s5 = inlined_call_operand.vmem [shape: f32[1,128], index: 5, kind: input, shape index: {}]
  %s6 = inlined_call_operand.vmem [shape: f32[8,128], index: 6, kind: output, shape index: {}]
  %s7 = sld [smem:[#allocation0]]
  $region34: #{stateful_lstm_forward.1} parent=0
    _
  %s9 = ssub.s32 1, %s7
  %s10 = scalar_select 0, %s9, %s7
  // Predicated region
  $region2: #{stateful_lstm_forward.1} parent=0 // pred_check
    _
  $region3: #{stateful_lstm_forward.1} parent=0 // pred_check_branch
    %12 = sbr.rel (0) target = $region5
  $region4: #{stateful_lstm_forward.1} parent=0 // pred_region
    _
  $region5: #{stateful_lstm_forward.1} parent=0 // pred_fallthru
    _
  // Predicated region
  $region6: #{stateful_lstm_forward.1} parent=0 // pred_check
    _
  $region7: #{stateful_lstm_forward.1} parent=0 // pred_check_branch
    %14 = sbr.rel (0) target = $region9
  $region8: #{stateful_lstm_forward.1} parent=0 // pred_region
    _
  $region9: #{stateful_lstm_forward.1} parent=0 // pred_fallthru
    _
  // Predicated region
  $region10: #{stateful_lstm_forward.1} parent=0 // pred_check
    _
  $region11: #{stateful_lstm_forward.1} parent=0 // pred_check_branch
    %16 = sbr.rel (0) target = $region13
  $region12: #{stateful_lstm_forward.1} parent=0 // pred_region
    _
  $region13: #{stateful_lstm_forward.1} parent=0 // pred_fallthru
    _
  // Predicated region
  $region14: #{stateful_lstm_forward.1} parent=0 // pred_check
    _
  $region15: #{stateful_lstm_forward.1} parent=0 // pred_check_branch
    %18 = sbr.rel (0) target = $region17
  $region16: #{stateful_lstm_forward.1} parent=0 // pred_region
    _
  $region17: #{stateful_lstm_forward.1} parent=0 // pred_fallthru
    _
  // Predicated region
  $region18: #{stateful_lstm_forward.1} parent=0 // pred_check
    _
  $region19: #{stateful_lstm_forward.1} parent=0 // pred_check_branch
    %20 = sbr.rel (0) target = $region21
  $region20: #{stateful_lstm_forward.1} parent=0 // pred_region
    _
  $region21: #{stateful_lstm_forward.1} parent=0 // pred_fallthru
    _
  // Predicated region
  $region22: #{stateful_lstm_forward.1} parent=0 // pred_check
    _
  $region23: #{stateful_lstm_forward.1} parent=0 // pred_check_branch
    %22 = sbr.rel (0) target = $region25
  $region24: #{stateful_lstm_forward.1} parent=0 // pred_region
    _
  $region25: #{stateful_lstm_forward.1} parent=0 // pred_fallthru
    _
  %v24 = vld [vmem:[%s0] sm:$0xf]
  %v25 = vld [vmem:[%s0 + $0x4] sm:$0xf]
  %v26 = vld [vmem:[%s0 + $0x8] sm:$0xf]
  %v27 = vld [vmem:[%s0 + $0xc] sm:$0xf]
  %v28 = vld [vmem:[%s0 + $0x10] sm:$0xf]
  %v29 = vld [vmem:[%s0 + $0x14] sm:$0xf]
  %v30 = vld [vmem:[%s0 + $0x18] sm:$0xf]
  %v31 = vld [vmem:[%s0 + $0x1c] sm:$0xf]
  %v32 = vld [vmem:[%s1] sm:$0x3]
  %v33 = vld [vmem:[%s3] sm:$0x1]
  %v35 = vlaneseq
  %v36 = vshrl.u32 %v35, 7
  %v37 = vsub.s32 0, %v36
  %v38 = vrot.slane %v33, %v37
  %v48 = vunpack.c.l.b16 %v24
  %v49 = vunpack.c.l.b16 %v25
  %v50 = vunpack.c.l.b16 %v26
  %v51 = vunpack.c.l.b16 %v27
  %v52 = vunpack.c.l.b16 %v28
  %v53 = vunpack.c.l.b16 %v29
  %v54 = vunpack.c.l.b16 %v30
  %v55 = vunpack.c.l.b16 %v31
  %v56 = vpack.c.b16 %v49, %v48
  %v57 = vpack.c.b16 %v51, %v50
  %v58 = vpack.c.b16 %v53, %v52
  %v59 = vpack.c.b16 %v55, %v54
  %vm60 = vcmask 31744
  %v62 = vsel %vm60, %v56, 0
  %v65 = vsel %vm60, %v57, 0
  %v68 = vsel %vm60, %v58, 0
  %v71 = vsel %vm60, %v59, 0
  %vm73 = vcmask 1041408
  %v75 = vsel %vm73, %v32, 0
  %77 = vmatprep.subr.bf16.mxu0 0
  %78 = vmatpush1.bf16.msra.mxu0 %v75
  %79 = vmatprep.subr.bf16.mxu0 0
  %80 = vmatpush1.bf16.msra.mxu0 0
  %81 = vmatprep.subr.bf16.mxu0 0
  %82 = vmatpush1.bf16.msra.mxu0 0
  %83 = vmatprep.subr.bf16.mxu0 0
  %84 = vmatpush1.bf16.msra.mxu0 0
  %85 = vmatprep.subr.bf16.mxu0 0
  %86 = vmatpush1.bf16.msra.mxu0 0
  %87 = vmatprep.subr.bf16.mxu0 0
  %88 = vmatpush1.bf16.msra.mxu0 0
  %89 = vmatprep.subr.bf16.mxu0 0
  %90 = vmatpush1.bf16.msra.mxu0 0
  %91 = vmatprep.subr.bf16.mxu0 0
  %92 = vmatpush1.bf16.msra.mxu0 0
  %93 = vmatprep.subr.bf16.mxu0 0
  %94 = vmatpush1.bf16.msra.mxu0 0
  %95 = vmatprep.subr.bf16.mxu0 0
  %96 = vmatpush1.bf16.msra.mxu0 0
  %97 = vmatprep.subr.bf16.mxu0 0
  %98 = vmatpush1.bf16.msra.mxu0 0
  %99 = vmatprep.subr.bf16.mxu0 0
  %100 = vmatpush1.bf16.msra.mxu0 0
  %101 = vmatprep.subr.bf16.mxu0 0
  %102 = vmatpush1.bf16.msra.mxu0 0
  %103 = vmatprep.subr.bf16.mxu0 0
  %104 = vmatpush1.bf16.msra.mxu0 0
  %105 = vmatprep.subr.bf16.mxu0 0
  %106 = vmatpush1.bf16.msra.mxu0 0
  %107 = vmatprep.subr.bf16.mxu0 0
  %108 = vmatpush1.bf16.msra.mxu0 0
  %109 = vmatprep.mubr.bf16.mxu0 0
  %110 = vmatmul.mubr.bf16.gmra.mrb[0].mxu0 %v62
  %v111 = vpop.f32.mrb[0].mxu0
  %v112 = vadd.f32 %v38, %v111
  %v113 = vpop.f32.mrb[0].mxu0
  %v114 = vpop.f32.mrb[0].mxu0
  %v115 = vadd.f32 %v38, %v114
  %v116 = vpop.f32.mrb[0].mxu0
  %117 = vmatprep.mubr.bf16.mxu0 0
  %118 = vmatmul.mubr.bf16.gmra.mrb[0].mxu0 %v65
  %v119 = vpop.f32.mrb[0].mxu0
  %v120 = vadd.f32 %v38, %v119
  %v121 = vpop.f32.mrb[0].mxu0
  %v122 = vpop.f32.mrb[0].mxu0
  %v123 = vadd.f32 %v38, %v122
  %v124 = vpop.f32.mrb[0].mxu0
  %125 = vmatprep.mubr.bf16.mxu0 0
  %126 = vmatmul.mubr.bf16.gmra.mrb[0].mxu0 %v68
  %v127 = vpop.f32.mrb[0].mxu0
  %v128 = vadd.f32 %v38, %v127
  %v129 = vpop.f32.mrb[0].mxu0
  %v130 = vpop.f32.mrb[0].mxu0
  %v131 = vadd.f32 %v38, %v130
  %v132 = vpop.f32.mrb[0].mxu0
  %133 = vmatprep.mubr.bf16.mxu0 0
  %134 = vmatmul.mubr.bf16.gmra.mrb[0].mxu0 %v71
  %v135 = vpop.f32.mrb[0].mxu0
  %v136 = vadd.f32 %v38, %v135
  %v137 = vpop.f32.mrb[0].mxu0
  %v138 = vpop.f32.mrb[0].mxu0
  %v139 = vadd.f32 %v38, %v138
  %v140 = vpop.f32.mrb[0].mxu0
  %141 = vdwg.mxu0
  %142 = vst [vmem:[#allocation2] sm:$0xff] %v112
  %143 = vst [vmem:[#allocation2 + $0x8] sm:$0xff] %v115
  %144 = vst [vmem:[#allocation2 + $0x10] sm:$0xff] %v120
  %145 = vst [vmem:[#allocation2 + $0x18] sm:$0xff] %v123
  %146 = vst [vmem:[#allocation2 + $0x20] sm:$0xff] %v128
  %147 = vst [vmem:[#allocation2 + $0x28] sm:$0xff] %v131
  %148 = vst [vmem:[#allocation2 + $0x30] sm:$0xff] %v136
  %149 = vst [vmem:[#allocation2 + $0x38] sm:$0xff] %v139
  %v150 = vlaneseq
  %v151 = vand.u32 %v150, 127
  %vm152 = vcmp.ge.s32.totalorder %v151, 64
  %vm153 = vcmp.lt.s32.totalorder %v151, 96
  %vm154 = vmand %vm152, %vm153
  %v155 = vld [vmem:[#allocation2] sm:$0xff]
  %v156 = vld [vmem:[%s2] sm:$0xf]
  %v157 = vld [vmem:[%s2 + $0x4] sm:$0xf]
  %v158 = vld [vmem:[%s2 + $0x8] sm:$0xf]
  %v159 = vld [vmem:[%s2 + $0xc] sm:$0xf]
  %v164 = vunpack.c.l.b16 %v156
  %v165 = vunpack.c.l.b16 %v157
  %v166 = vunpack.c.l.b16 %v158
  %v167 = vunpack.c.l.b16 %v159
  %v168 = vpack.c.b16 %v165, %v164
  %v169 = vpack.c.b16 %v167, %v166
  %vm172 = vcmask 261120
  %v174 = vsel %vm172, 0, 0
  %176 = vmatprep.subr.bf16.mxu0 0
  %177 = vmatpush1.bf16.msra.mxu0 %v168
  %178 = vmatprep.subr.bf16.mxu0 0
  %179 = vmatpush1.bf16.msra.mxu0 %v169
  %180 = vmatprep.subr.bf16.mxu0 0
  %181 = vmatpush1.bf16.msra.mxu0 0
  %182 = vmatprep.subr.bf16.mxu0 0
  %183 = vmatpush1.bf16.msra.mxu0 0
  %184 = vmatprep.subr.bf16.mxu0 0
  %185 = vmatpush1.bf16.msra.mxu0 0
  %186 = vmatprep.subr.bf16.mxu0 0
  %187 = vmatpush1.bf16.msra.mxu0 0
  %188 = vmatprep.subr.bf16.mxu0 0
  %189 = vmatpush1.bf16.msra.mxu0 0
  %190 = vmatprep.subr.bf16.mxu0 0
  %191 = vmatpush1.bf16.msra.mxu0 0
  %192 = vmatprep.subr.bf16.mxu0 0
  %193 = vmatpush1.bf16.msra.mxu0 0
  %194 = vmatprep.subr.bf16.mxu0 0
  %195 = vmatpush1.bf16.msra.mxu0 0
  %196 = vmatprep.subr.bf16.mxu0 0
  %197 = vmatpush1.bf16.msra.mxu0 0
  %198 = vmatprep.subr.bf16.mxu0 0
  %199 = vmatpush1.bf16.msra.mxu0 0
  %200 = vmatprep.subr.bf16.mxu0 0
  %201 = vmatpush1.bf16.msra.mxu0 0
  %202 = vmatprep.subr.bf16.mxu0 0
  %203 = vmatpush1.bf16.msra.mxu0 0
  %204 = vmatprep.subr.bf16.mxu0 0
  %205 = vmatpush1.bf16.msra.mxu0 0
  %206 = vmatprep.subr.bf16.mxu0 0
  %207 = vmatpush1.bf16.msra.mxu0 0
  %208 = vmatprep.mubr.bf16.mxu0 0
  %209 = vmatmul.mubr.bf16.gmra.mrb[0].mxu0 %v174
  %v210 = vpop.f32.mrb[0].mxu0
  %v211 = vadd.f32 0.0, %v210
  %v212 = vpop.f32.mrb[0].mxu0
  %v213 = vpop.f32.mrb[0].mxu0
  %v214 = vpop.f32.mrb[0].mxu0
  %215 = vdwg.mxu0
  %v216 = vadd.f32 %v155, %v211
  %v217 = vxor.u32 %v216, 2147483648
  %v218 = vmul.f32 %v217, 1.442695
  %v219 = vpow.pop %v218
  %v220 = vadd.f32 %v219, 1.0
  %v221 = vrcp.pop %v220
  %v222 = vmul.f32 1.0, %v221
  %v223 = vtanh.pop %v216
  %v224 = vsel %vm154, %v223, %v222
  %v225 = vmul.f32 %v224, 0.0
  %227 = vrot.lane.b32.xlu0 %v224, 64
  %v228 = vpop.permute.xlu0 %227
  %v230 = vmul.f32 %v224, %v228
  %232 = vrot.lane.b32.xlu0 %v230, 32
  %v233 = vpop.permute.xlu0 %232
  %v235 = vadd.f32 %v225, %v233
  %v236 = vtanh.pop %v235
  %238 = vrot.lane.b32.xlu0 %v236, 64
  %v239 = vpop.permute.xlu0 %238
  %v241 = vmul.f32 %v224, %v239
  %s242 = scalar_lea.vmem [#allocation2], 8
  %v243 = vld [vmem:[%s242] sm:$0xff]
  %v244 = vpack.c.bf16 %v241, %v241
  %246 = vrot.lane.b32.xlu0 %v244, 32
  %v247 = vpop.permute.xlu0 %246
  %v249 = vsel %vm172, %v247, 0
  %251 = vmatprep.subr.bf16.mxu0 0
  %252 = vmatpush1.bf16.msra.mxu0 %v168
  %253 = vmatprep.subr.bf16.mxu0 0
  %254 = vmatpush1.bf16.msra.mxu0 %v169
  %255 = vmatprep.subr.bf16.mxu0 0
  %256 = vmatpush1.bf16.msra.mxu0 0
  %257 = vmatprep.subr.bf16.mxu0 0
  %258 = vmatpush1.bf16.msra.mxu0 0
  %259 = vmatprep.subr.bf16.mxu0 0
  %260 = vmatpush1.bf16.msra.mxu0 0
  %261 = vmatprep.subr.bf16.mxu0 0
  %262 = vmatpush1.bf16.msra.mxu0 0
  %263 = vmatprep.subr.bf16.mxu0 0
  %264 = vmatpush1.bf16.msra.mxu0 0
  %265 = vmatprep.subr.bf16.mxu0 0
  %266 = vmatpush1.bf16.msra.mxu0 0
  %267 = vmatprep.subr.bf16.mxu0 0
  %268 = vmatpush1.bf16.msra.mxu0 0
  %269 = vmatprep.subr.bf16.mxu0 0
  %270 = vmatpush1.bf16.msra.mxu0 0
  %271 = vmatprep.subr.bf16.mxu0 0
  %272 = vmatpush1.bf16.msra.mxu0 0
  %273 = vmatprep.subr.bf16.mxu0 0
  %274 = vmatpush1.bf16.msra.mxu0 0
  %275 = vmatprep.subr.bf16.mxu0 0
  %276 = vmatpush1.bf16.msra.mxu0 0
  %277 = vmatprep.subr.bf16.mxu0 0
  %278 = vmatpush1.bf16.msra.mxu0 0
  %279 = vmatprep.subr.bf16.mxu0 0
  %280 = vmatpush1.bf16.msra.mxu0 0
  %281 = vmatprep.subr.bf16.mxu0 0
  %282 = vmatpush1.bf16.msra.mxu0 0
  %283 = vmatprep.mubr.bf16.mxu0 0
  %284 = vmatmul.mubr.bf16.gmra.mrb[0].mxu0 %v249
  %v285 = vpop.f32.mrb[0].mxu0
  %v286 = vadd.f32 0.0, %v285
  %v287 = vpop.f32.mrb[0].mxu0
  %v288 = vpop.f32.mrb[0].mxu0
  %v289 = vpop.f32.mrb[0].mxu0
  %290 = vdwg.mxu0
  %v291 = vadd.f32 %v243, %v286
  %v292 = vxor.u32 %v291, 2147483648
  %v293 = vmul.f32 %v292, 1.442695
  %v294 = vpow.pop %v293
  %v295 = vadd.f32 %v294, 1.0
  %v296 = vrcp.pop %v295
  %v297 = vmul.f32 1.0, %v296
  %v298 = vtanh.pop %v291
  %v299 = vsel %vm154, %v298, %v297
  %v300 = vmul.f32 %v299, %v235
  %302 = vrot.lane.b32.xlu0 %v299, 64
  %v303 = vpop.permute.xlu0 %302
  %v305 = vmul.f32 %v299, %v303
  %307 = vrot.lane.b32.xlu0 %v305, 32
  %v308 = vpop.permute.xlu0 %307
  %v310 = vadd.f32 %v300, %v308
  %v311 = vtanh.pop %v310
  %313 = vrot.lane.b32.xlu0 %v311, 64
  %v314 = vpop.permute.xlu0 %313
  %v316 = vmul.f32 %v299, %v314
  %v317 = vmax.f32 %v241, %v316
  %s318 = scalar_lea.vmem [#allocation2], 16
  %v319 = vld [vmem:[%s318] sm:$0xff]
  %v320 = vpack.c.bf16 %v316, %v316
  %322 = vrot.lane.b32.xlu0 %v320, 32
  %v323 = vpop.permute.xlu0 %322
  %v325 = vsel %vm172, %v323, 0
  %327 = vmatprep.subr.bf16.mxu0 0
  %328 = vmatpush1.bf16.msra.mxu0 %v168
  %329 = vmatprep.subr.bf16.mxu0 0
  %330 = vmatpush1.bf16.msra.mxu0 %v169
  %331 = vmatprep.subr.bf16.mxu0 0
  %332 = vmatpush1.bf16.msra.mxu0 0
  %333 = vmatprep.subr.bf16.mxu0 0
  %334 = vmatpush1.bf16.msra.mxu0 0
  %335 = vmatprep.subr.bf16.mxu0 0
  %336 = vmatpush1.bf16.msra.mxu0 0
  %337 = vmatprep.subr.bf16.mxu0 0
  %338 = vmatpush1.bf16.msra.mxu0 0
  %339 = vmatprep.subr.bf16.mxu0 0
  %340 = vmatpush1.bf16.msra.mxu0 0
  %341 = vmatprep.subr.bf16.mxu0 0
  %342 = vmatpush1.bf16.msra.mxu0 0
  %343 = vmatprep.subr.bf16.mxu0 0
  %344 = vmatpush1.bf16.msra.mxu0 0
  %345 = vmatprep.subr.bf16.mxu0 0
  %346 = vmatpush1.bf16.msra.mxu0 0
  %347 = vmatprep.subr.bf16.mxu0 0
  %348 = vmatpush1.bf16.msra.mxu0 0
  %349 = vmatprep.subr.bf16.mxu0 0
  %350 = vmatpush1.bf16.msra.mxu0 0
  %351 = vmatprep.subr.bf16.mxu0 0
  %352 = vmatpush1.bf16.msra.mxu0 0
  %353 = vmatprep.subr.bf16.mxu0 0
  %354 = vmatpush1.bf16.msra.mxu0 0
  %355 = vmatprep.subr.bf16.mxu0 0
  %356 = vmatpush1.bf16.msra.mxu0 0
  %357 = vmatprep.subr.bf16.mxu0 0
  %358 = vmatpush1.bf16.msra.mxu0 0
  %359 = vmatprep.mubr.bf16.mxu0 0
  %360 = vmatmul.mubr.bf16.gmra.mrb[0].mxu0 %v325
  %v361 = vpop.f32.mrb[0].mxu0
  %v362 = vadd.f32 0.0, %v361
  %v363 = vpop.f32.mrb[0].mxu0
  %v364 = vpop.f32.mrb[0].mxu0
  %v365 = vpop.f32.mrb[0].mxu0
  %366 = vdwg.mxu0
  %v367 = vadd.f32 %v319, %v362
  %v368 = vxor.u32 %v367, 2147483648
  %v369 = vmul.f32 %v368, 1.442695
  %v370 = vpow.pop %v369
  %v371 = vadd.f32 %v370, 1.0
  %v372 = vrcp.pop %v371
  %v373 = vmul.f32 1.0, %v372
  %v374 = vtanh.pop %v367
  %v375 = vsel %vm154, %v374, %v373
  %v376 = vmul.f32 %v375, %v310
  %378 = vrot.lane.b32.xlu0 %v375, 64
  %v379 = vpop.permute.xlu0 %378
  %v381 = vmul.f32 %v375, %v379
  %383 = vrot.lane.b32.xlu0 %v381, 32
  %v384 = vpop.permute.xlu0 %383
  %v386 = vadd.f32 %v376, %v384
  %v387 = vtanh.pop %v386
  %389 = vrot.lane.b32.xlu0 %v387, 64
  %v390 = vpop.permute.xlu0 %389
  %v392 = vmul.f32 %v375, %v390
  %v393 = vmax.f32 %v317, %v392
  %s394 = scalar_lea.vmem [#allocation2], 24
  %v395 = vld [vmem:[%s394] sm:$0xff]
  %v396 = vpack.c.bf16 %v392, %v392
  %398 = vrot.lane.b32.xlu0 %v396, 32
  %v399 = vpop.permute.xlu0 %398
  %v401 = vsel %vm172, %v399, 0
  %403 = vmatprep.subr.bf16.mxu0 0
  %404 = vmatpush1.bf16.msra.mxu0 %v168
  %405 = vmatprep.subr.bf16.mxu0 0
  %406 = vmatpush1.bf16.msra.mxu0 %v169
  %407 = vmatprep.subr.bf16.mxu0 0
  %408 = vmatpush1.bf16.msra.mxu0 0
  %409 = vmatprep.subr.bf16.mxu0 0
  %410 = vmatpush1.bf16.msra.mxu0 0
  %411 = vmatprep.subr.bf16.mxu0 0
  %412 = vmatpush1.bf16.msra.mxu0 0
  %413 = vmatprep.subr.bf16.mxu0 0
  %414 = vmatpush1.bf16.msra.mxu0 0
  %415 = vmatprep.subr.bf16.mxu0 0
  %416 = vmatpush1.bf16.msra.mxu0 0
  %417 = vmatprep.subr.bf16.mxu0 0
  %418 = vmatpush1.bf16.msra.mxu0 0
  %419 = vmatprep.subr.bf16.mxu0 0
  %420 = vmatpush1.bf16.msra.mxu0 0
  %421 = vmatprep.subr.bf16.mxu0 0
  %422 = vmatpush1.bf16.msra.mxu0 0
  %423 = vmatprep.subr.bf16.mxu0 0
  %424 = vmatpush1.bf16.msra.mxu0 0
  %425 = vmatprep.subr.bf16.mxu0 0
  %426 = vmatpush1.bf16.msra.mxu0 0
  %427 = vmatprep.subr.bf16.mxu0 0
  %428 = vmatpush1.bf16.msra.mxu0 0
  %429 = vmatprep.subr.bf16.mxu0 0
  %430 = vmatpush1.bf16.msra.mxu0 0
  %431 = vmatprep.subr.bf16.mxu0 0
  %432 = vmatpush1.bf16.msra.mxu0 0
  %433 = vmatprep.subr.bf16.mxu0 0
  %434 = vmatpush1.bf16.msra.mxu0 0
  %435 = vmatprep.mubr.bf16.mxu0 0
  %436 = vmatmul.mubr.bf16.gmra.mrb[0].mxu0 %v401
  %v437 = vpop.f32.mrb[0].mxu0
  %v438 = vadd.f32 0.0, %v437
  %v439 = vpop.f32.mrb[0].mxu0
  %v440 = vpop.f32.mrb[0].mxu0
  %v441 = vpop.f32.mrb[0].mxu0
  %442 = vdwg.mxu0
  %v443 = vadd.f32 %v395, %v438
  %v444 = vxor.u32 %v443, 2147483648
  %v445 = vmul.f32 %v444, 1.442695
  %v446 = vpow.pop %v445
  %v447 = vadd.f32 %v446, 1.0
  %v448 = vrcp.pop %v447
  %v449 = vmul.f32 1.0, %v448
  %v450 = vtanh.pop %v443
  %v451 = vsel %vm154, %v450, %v449
  %v452 = vmul.f32 %v451, %v386
  %454 = vrot.lane.b32.xlu0 %v451, 64
  %v455 = vpop.permute.xlu0 %454
  %v457 = vmul.f32 %v451, %v455
  %459 = vrot.lane.b32.xlu0 %v457, 32
  %v460 = vpop.permute.xlu0 %459
  %v462 = vadd.f32 %v452, %v460
  %v463 = vtanh.pop %v462
  %465 = vrot.lane.b32.xlu0 %v463, 64
  %v466 = vpop.permute.xlu0 %465
  %v468 = vmul.f32 %v451, %v466
  %v469 = vmax.f32 %v393, %v468
  %s470 = scalar_lea.vmem [#allocation2], 32
  %v471 = vld [vmem:[%s470] sm:$0xff]
  %v472 = vpack.c.bf16 %v468, %v468
  %474 = vrot.lane.b32.xlu0 %v472, 32
  %v475 = vpop.permute.xlu0 %474
  %v477 = vsel %vm172, %v475, 0
  %479 = vmatprep.subr.bf16.mxu0 0
  %480 = vmatpush1.bf16.msra.mxu0 %v168
  %481 = vmatprep.subr.bf16.mxu0 0
  %482 = vmatpush1.bf16.msra.mxu0 %v169
  %483 = vmatprep.subr.bf16.mxu0 0
  %484 = vmatpush1.bf16.msra.mxu0 0
  %485 = vmatprep.subr.bf16.mxu0 0
  %486 = vmatpush1.bf16.msra.mxu0 0
  %487 = vmatprep.subr.bf16.mxu0 0
  %488 = vmatpush1.bf16.msra.mxu0 0
  %489 = vmatprep.subr.bf16.mxu0 0
  %490 = vmatpush1.bf16.msra.mxu0 0
  %491 = vmatprep.subr.bf16.mxu0 0
  %492 = vmatpush1.bf16.msra.mxu0 0
  %493 = vmatprep.subr.bf16.mxu0 0
  %494 = vmatpush1.bf16.msra.mxu0 0
  %495 = vmatprep.subr.bf16.mxu0 0
  %496 = vmatpush1.bf16.msra.mxu0 0
  %497 = vmatprep.subr.bf16.mxu0 0
  %498 = vmatpush1.bf16.msra.mxu0 0
  %499 = vmatprep.subr.bf16.mxu0 0
  %500 = vmatpush1.bf16.msra.mxu0 0
  %501 = vmatprep.subr.bf16.mxu0 0
  %502 = vmatpush1.bf16.msra.mxu0 0
  %503 = vmatprep.subr.bf16.mxu0 0
  %504 = vmatpush1.bf16.msra.mxu0 0
  %505 = vmatprep.subr.bf16.mxu0 0
  %506 = vmatpush1.bf16.msra.mxu0 0
  %507 = vmatprep.subr.bf16.mxu0 0
  %508 = vmatpush1.bf16.msra.mxu0 0
  %509 = vmatprep.subr.bf16.mxu0 0
  %510 = vmatpush1.bf16.msra.mxu0 0
  %511 = vmatprep.mubr.bf16.mxu0 0
  %512 = vmatmul.mubr.bf16.gmra.mrb[0].mxu0 %v477
  %v513 = vpop.f32.mrb[0].mxu0
  %v514 = vadd.f32 0.0, %v513
  %v515 = vpop.f32.mrb[0].mxu0
  %v516 = vpop.f32.mrb[0].mxu0
  %v517 = vpop.f32.mrb[0].mxu0
  %518 = vdwg.mxu0
  %v519 = vadd.f32 %v471, %v514
  %v520 = vxor.u32 %v519, 2147483648
  %v521 = vmul.f32 %v520, 1.442695
  %v522 = vpow.pop %v521
  %v523 = vadd.f32 %v522, 1.0
  %v524 = vrcp.pop %v523
  %v525 = vmul.f32 1.0, %v524
  %v526 = vtanh.pop %v519
  %v527 = vsel %vm154, %v526, %v525
  %v528 = vmul.f32 %v527, %v462
  %530 = vrot.lane.b32.xlu0 %v527, 64
  %v531 = vpop.permute.xlu0 %530
  %v533 = vmul.f32 %v527, %v531
  %535 = vrot.lane.b32.xlu0 %v533, 32
  %v536 = vpop.permute.xlu0 %535
  %v538 = vadd.f32 %v528, %v536
  %v539 = vtanh.pop %v538
  %541 = vrot.lane.b32.xlu0 %v539, 64
  %v542 = vpop.permute.xlu0 %541
  %v544 = vmul.f32 %v527, %v542
  %v545 = vmax.f32 %v469, %v544
  %s546 = scalar_lea.vmem [#allocation2], 40
  %v547 = vld [vmem:[%s546] sm:$0xff]
  %v548 = vpack.c.bf16 %v544, %v544
  %550 = vrot.lane.b32.xlu0 %v548, 32
  %v551 = vpop.permute.xlu0 %550
  %v553 = vsel %vm172, %v551, 0
  %555 = vmatprep.subr.bf16.mxu0 0
  %556 = vmatpush1.bf16.msra.mxu0 %v168
  %557 = vmatprep.subr.bf16.mxu0 0
  %558 = vmatpush1.bf16.msra.mxu0 %v169
  %559 = vmatprep.subr.bf16.mxu0 0
  %560 = vmatpush1.bf16.msra.mxu0 0
  %561 = vmatprep.subr.bf16.mxu0 0
  %562 = vmatpush1.bf16.msra.mxu0 0
  %563 = vmatprep.subr.bf16.mxu0 0
  %564 = vmatpush1.bf16.msra.mxu0 0
  %565 = vmatprep.subr.bf16.mxu0 0
  %566 = vmatpush1.bf16.msra.mxu0 0
  %567 = vmatprep.subr.bf16.mxu0 0
  %568 = vmatpush1.bf16.msra.mxu0 0
  %569 = vmatprep.subr.bf16.mxu0 0
  %570 = vmatpush1.bf16.msra.mxu0 0
  %571 = vmatprep.subr.bf16.mxu0 0
  %572 = vmatpush1.bf16.msra.mxu0 0
  %573 = vmatprep.subr.bf16.mxu0 0
  %574 = vmatpush1.bf16.msra.mxu0 0
  %575 = vmatprep.subr.bf16.mxu0 0
  %576 = vmatpush1.bf16.msra.mxu0 0
  %577 = vmatprep.subr.bf16.mxu0 0
  %578 = vmatpush1.bf16.msra.mxu0 0
  %579 = vmatprep.subr.bf16.mxu0 0
  %580 = vmatpush1.bf16.msra.mxu0 0
  %581 = vmatprep.subr.bf16.mxu0 0
  %582 = vmatpush1.bf16.msra.mxu0 0
  %583 = vmatprep.subr.bf16.mxu0 0
  %584 = vmatpush1.bf16.msra.mxu0 0
  %585 = vmatprep.subr.bf16.mxu0 0
  %586 = vmatpush1.bf16.msra.mxu0 0
  %587 = vmatprep.mubr.bf16.mxu0 0
  %588 = vmatmul.mubr.bf16.gmra.mrb[0].mxu0 %v553
  %v589 = vpop.f32.mrb[0].mxu0
  %v590 = vadd.f32 0.0, %v589
  %v591 = vpop.f32.mrb[0].mxu0
  %v592 = vpop.f32.mrb[0].mxu0
  %v593 = vpop.f32.mrb[0].mxu0
  %594 = vdwg.mxu0
  %v595 = vadd.f32 %v547, %v590
  %v596 = vxor.u32 %v595, 2147483648
  %v597 = vmul.f32 %v596, 1.442695
  %v598 = vpow.pop %v597
  %v599 = vadd.f32 %v598, 1.0
  %v600 = vrcp.pop %v599
  %v601 = vmul.f32 1.0, %v600
  %v602 = vtanh.pop %v595
  %v603 = vsel %vm154, %v602, %v601
  %v604 = vmul.f32 %v603, %v538
  %606 = vrot.lane.b32.xlu0 %v603, 64
  %v607 = vpop.permute.xlu0 %606
  %v609 = vmul.f32 %v603, %v607
  %611 = vrot.lane.b32.xlu0 %v609, 32
  %v612 = vpop.permute.xlu0 %611
  %v614 = vadd.f32 %v604, %v612
  %v615 = vtanh.pop %v614
  %617 = vrot.lane.b32.xlu0 %v615, 64
  %v618 = vpop.permute.xlu0 %617
  %v620 = vmul.f32 %v603, %v618
  %v621 = vmax.f32 %v545, %v620
  %s622 = scalar_lea.vmem [#allocation2], 48
  %v623 = vld [vmem:[%s622] sm:$0xff]
  %v624 = vpack.c.bf16 %v620, %v620
  %626 = vrot.lane.b32.xlu0 %v624, 32
  %v627 = vpop.permute.xlu0 %626
  %v629 = vsel %vm172, %v627, 0
  %631 = vmatprep.subr.bf16.mxu0 0
  %632 = vmatpush1.bf16.msra.mxu0 %v168
  %633 = vmatprep.subr.bf16.mxu0 0
  %634 = vmatpush1.bf16.msra.mxu0 %v169
  %635 = vmatprep.subr.bf16.mxu0 0
  %636 = vmatpush1.bf16.msra.mxu0 0
  %637 = vmatprep.subr.bf16.mxu0 0
  %638 = vmatpush1.bf16.msra.mxu0 0
  %639 = vmatprep.subr.bf16.mxu0 0
  %640 = vmatpush1.bf16.msra.mxu0 0
  %641 = vmatprep.subr.bf16.mxu0 0
  %642 = vmatpush1.bf16.msra.mxu0 0
  %643 = vmatprep.subr.bf16.mxu0 0
  %644 = vmatpush1.bf16.msra.mxu0 0
  %645 = vmatprep.subr.bf16.mxu0 0
  %646 = vmatpush1.bf16.msra.mxu0 0
  %647 = vmatprep.subr.bf16.mxu0 0
  %648 = vmatpush1.bf16.msra.mxu0 0
  %649 = vmatprep.subr.bf16.mxu0 0
  %650 = vmatpush1.bf16.msra.mxu0 0
  %651 = vmatprep.subr.bf16.mxu0 0
  %652 = vmatpush1.bf16.msra.mxu0 0
  %653 = vmatprep.subr.bf16.mxu0 0
  %654 = vmatpush1.bf16.msra.mxu0 0
  %655 = vmatprep.subr.bf16.mxu0 0
  %656 = vmatpush1.bf16.msra.mxu0 0
  %657 = vmatprep.subr.bf16.mxu0 0
  %658 = vmatpush1.bf16.msra.mxu0 0
  %659 = vmatprep.subr.bf16.mxu0 0
  %660 = vmatpush1.bf16.msra.mxu0 0
  %661 = vmatprep.subr.bf16.mxu0 0
  %662 = vmatpush1.bf16.msra.mxu0 0
  %663 = vmatprep.mubr.bf16.mxu0 0
  %664 = vmatmul.mubr.bf16.gmra.mrb[0].mxu0 %v629
  %v665 = vpop.f32.mrb[0].mxu0
  %v666 = vadd.f32 0.0, %v665
  %v667 = vpop.f32.mrb[0].mxu0
  %v668 = vpop.f32.mrb[0].mxu0
  %v669 = vpop.f32.mrb[0].mxu0
  %670 = vdwg.mxu0
  %v671 = vadd.f32 %v623, %v666
  %v672 = vxor.u32 %v671, 2147483648
  %v673 = vmul.f32 %v672, 1.442695
  %v674 = vpow.pop %v673
  %v675 = vadd.f32 %v674, 1.0
  %v676 = vrcp.pop %v675
  %v677 = vmul.f32 1.0, %v676
  %v678 = vtanh.pop %v671
  %v679 = vsel %vm154, %v678, %v677
  %v680 = vmul.f32 %v679, %v614
  %682 = vrot.lane.b32.xlu0 %v679, 64
  %v683 = vpop.permute.xlu0 %682
  %v685 = vmul.f32 %v679, %v683
  %687 = vrot.lane.b32.xlu0 %v685, 32
  %v688 = vpop.permute.xlu0 %687
  %v690 = vadd.f32 %v680, %v688
  %v691 = vtanh.pop %v690
  %693 = vrot.lane.b32.xlu0 %v691, 64
  %v694 = vpop.permute.xlu0 %693
  %v696 = vmul.f32 %v679, %v694
  %v697 = vmax.f32 %v621, %v696
  %s698 = scalar_lea.vmem [#allocation2], 56
  %v699 = vld [vmem:[%s698] sm:$0xff]
  %v700 = vpack.c.bf16 %v696, %v696
  %702 = vrot.lane.b32.xlu0 %v700, 32
  %v703 = vpop.permute.xlu0 %702
  %v705 = vsel %vm172, %v703, 0
  %707 = vmatprep.subr.bf16.mxu0 0
  %708 = vmatpush1.bf16.msra.mxu0 %v168
  %709 = vmatprep.subr.bf16.mxu0 0
  %710 = vmatpush1.bf16.msra.mxu0 %v169
  %711 = vmatprep.subr.bf16.mxu0 0
  %712 = vmatpush1.bf16.msra.mxu0 0
  %713 = vmatprep.subr.bf16.mxu0 0
  %714 = vmatpush1.bf16.msra.mxu0 0
  %715 = vmatprep.subr.bf16.mxu0 0
  %716 = vmatpush1.bf16.msra.mxu0 0
  %717 = vmatprep.subr.bf16.mxu0 0
  %718 = vmatpush1.bf16.msra.mxu0 0
  %719 = vmatprep.subr.bf16.mxu0 0
  %720 = vmatpush1.bf16.msra.mxu0 0
  %721 = vmatprep.subr.bf16.mxu0 0
  %722 = vmatpush1.bf16.msra.mxu0 0
  %723 = vmatprep.subr.bf16.mxu0 0
  %724 = vmatpush1.bf16.msra.mxu0 0
  %725 = vmatprep.subr.bf16.mxu0 0
  %726 = vmatpush1.bf16.msra.mxu0 0
  %727 = vmatprep.subr.bf16.mxu0 0
  %728 = vmatpush1.bf16.msra.mxu0 0
  %729 = vmatprep.subr.bf16.mxu0 0
  %730 = vmatpush1.bf16.msra.mxu0 0
  %731 = vmatprep.subr.bf16.mxu0 0
  %732 = vmatpush1.bf16.msra.mxu0 0
  %733 = vmatprep.subr.bf16.mxu0 0
  %734 = vmatpush1.bf16.msra.mxu0 0
  %735 = vmatprep.subr.bf16.mxu0 0
  %736 = vmatpush1.bf16.msra.mxu0 0
  %737 = vmatprep.subr.bf16.mxu0 0
  %738 = vmatpush1.bf16.msra.mxu0 0
  %739 = vmatprep.mubr.bf16.mxu0 0
  %740 = vmatmul.mubr.bf16.gmra.mrb[0].mxu0 %v705
  %v741 = vpop.f32.mrb[0].mxu0
  %v742 = vadd.f32 0.0, %v741
  %v743 = vpop.f32.mrb[0].mxu0
  %v744 = vpop.f32.mrb[0].mxu0
  %v745 = vpop.f32.mrb[0].mxu0
  %746 = vdwg.mxu0
  %v747 = vadd.f32 %v699, %v742
  %v748 = vxor.u32 %v747, 2147483648
  %v749 = vmul.f32 %v748, 1.442695
  %v750 = vpow.pop %v749
  %v751 = vadd.f32 %v750, 1.0
  %v752 = vrcp.pop %v751
  %v753 = vmul.f32 1.0, %v752
  %v754 = vtanh.pop %v747
  %v755 = vsel %vm154, %v754, %v753
  %v756 = vmul.f32 %v755, %v690
  %758 = vrot.lane.b32.xlu0 %v755, 64
  %v759 = vpop.permute.xlu0 %758
  %v761 = vmul.f32 %v755, %v759
  %763 = vrot.lane.b32.xlu0 %v761, 32
  %v764 = vpop.permute.xlu0 %763
  %v766 = vadd.f32 %v756, %v764
  %v767 = vtanh.pop %v766
  %769 = vrot.lane.b32.xlu0 %v767, 64
  %v770 = vpop.permute.xlu0 %769
  %v772 = vmul.f32 %v755, %v770
  %v773 = vmax.f32 %v697, %v772
  %v774 = vld [vmem:[%s4] sm:$0xff]
  %v775 = vld [vmem:[%s4 + $0x8] sm:$0xff]
  %v776 = vld [vmem:[%s4 + $0x10] sm:$0xff]
  %v777 = vld [vmem:[%s4 + $0x18] sm:$0xff]
  %v778 = vld [vmem:[%s5] sm:$0x1]
  %v780 = vlaneseq
  %v781 = vshrl.u32 %v780, 7
  %v782 = vsub.s32 0, %v781
  %v783 = vrot.slane %v778, %v782
  %786 = vrot.lane.b32.xlu0 %v773, 32
  %v787 = vpop.permute.xlu0 %786
  %v788 = vsel %vm172, %v787, 0
  %790 = vmatprep.subr.mxu0 0.0
  %791 = vmatpush1.msra.mxu0 %v774
  %792 = vmatprep.subr.mxu0 0.0
  %793 = vmatpush1.msra.mxu0 %v775
  %794 = vmatprep.subr.mxu0 0.0
  %795 = vmatpush1.msra.mxu0 %v776
  %796 = vmatprep.subr.mxu0 0.0
  %797 = vmatpush1.msra.mxu0 %v777
  %798 = vmatprep.subr.mxu0 0.0
  %799 = vmatpush1.msra.mxu0 0.0
  %800 = vmatprep.subr.mxu0 0.0
  %801 = vmatpush1.msra.mxu0 0.0
  %802 = vmatprep.subr.mxu0 0.0
  %803 = vmatpush1.msra.mxu0 0.0
  %804 = vmatprep.subr.mxu0 0.0
  %805 = vmatpush1.msra.mxu0 0.0
  %806 = vmatprep.subr.mxu0 0.0
  %807 = vmatpush1.msra.mxu0 0.0
  %808 = vmatprep.subr.mxu0 0.0
  %809 = vmatpush1.msra.mxu0 0.0
  %810 = vmatprep.subr.mxu0 0.0
  %811 = vmatpush1.msra.mxu0 0.0
  %812 = vmatprep.subr.mxu0 0.0
  %813 = vmatpush1.msra.mxu0 0.0
  %814 = vmatprep.subr.mxu0 0.0
  %815 = vmatpush1.msra.mxu0 0.0
  %816 = vmatprep.subr.mxu0 0.0
  %817 = vmatpush1.msra.mxu0 0.0
  %818 = vmatprep.subr.mxu0 0.0
  %819 = vmatpush1.msra.mxu0 0.0
  %820 = vmatprep.subr.mxu0 0.0
  %821 = vmatpush1.msra.mxu0 0.0
  %822 = vmatprep.subr.mxu0 0.0
  %823 = vmatpush1.msra.mxu0 0.0
  %824 = vmatprep.subr.mxu0 0.0
  %825 = vmatpush1.msra.mxu0 0.0
  %826 = vmatprep.subr.mxu0 0.0
  %827 = vmatpush1.msra.mxu0 0.0
  %828 = vmatprep.subr.mxu0 0.0
  %829 = vmatpush1.msra.mxu0 0.0
  %830 = vmatprep.subr.mxu0 0.0
  %831 = vmatpush1.msra.mxu0 0.0
  %832 = vmatprep.subr.mxu0 0.0
  %833 = vmatpush1.msra.mxu0 0.0
  %834 = vmatprep.subr.mxu0 0.0
  %835 = vmatpush1.msra.mxu0 0.0
  %836 = vmatprep.subr.mxu0 0.0
  %837 = vmatpush1.msra.mxu0 0.0
  %838 = vmatprep.subr.mxu0 0.0
  %839 = vmatpush1.msra.mxu0 0.0
  %840 = vmatprep.subr.mxu0 0.0
  %841 = vmatpush1.msra.mxu0 0.0
  %842 = vmatprep.subr.mxu0 0.0
  %843 = vmatpush1.msra.mxu0 0.0
  %844 = vmatprep.subr.mxu0 0.0
  %845 = vmatpush1.msra.mxu0 0.0
  %846 = vmatprep.subr.mxu0 0.0
  %847 = vmatpush1.msra.mxu0 0.0
  %848 = vmatprep.subr.mxu0 0.0
  %849 = vmatpush1.msra.mxu0 0.0
  %850 = vmatprep.subr.mxu0 0.0
  %851 = vmatpush1.msra.mxu0 0.0
  %852 = vmatprep.subr.mxu0 0.0
  %853 = vmatpush1.msra.mxu0 0.0
  %854 = vmatprep.mubr.f32.mxu0 0.0
  %855 = vmatmul.mubr.f32.gmra.mrb[0].mxu0 %v788
  %v856 = vpop.f32.mrb[0].mxu0
  %v857 = vadd.f32 %v783, %v856
  %v858 = vpop.f32.mrb[0].mxu0
  %859 = vdwg.mxu0
  %860 = vst [vmem:[%s6] sm:$0xff] %v857
  // Predicated region
  $region26: #{stateful_lstm_forward.1} parent=0 // pred_check
    _
  $region27: #{stateful_lstm_forward.1} parent=0 // pred_check_branch
    %862 = sbr.rel (0) target = $region29
  $region28: #{stateful_lstm_forward.1} parent=0 // pred_region
    _
  $region29: #{stateful_lstm_forward.1} parent=0 // pred_fallthru
    _
  // Predicated region
  $region30: #{stateful_lstm_forward.1} parent=0 // pred_check
    _
  $region31: #{stateful_lstm_forward.1} parent=0 // pred_check_branch
    %864 = sbr.rel (0) target = $region33
  $region32: #{stateful_lstm_forward.1} parent=0 // pred_region
    _
  $region33: #{stateful_lstm_forward.1} parent=0 // pred_fallthru
    _

</llo_original>
